<compile_context>
chip_gen: v7x
topology: tpu7x:2x2x1
jax: 0.10.0
libtpu: 0.0.40
codegen_flags: <defaults>
</compile_context>

<pallas_src>
import functools
import math

import jax
import jax.numpy as jnp
from jax.experimental import pallas as pl
from jax.experimental.pallas import tpu as pltpu

NEG_SLOPE = 0.01      # F.leaky_relu default negative_slope
MASK_VAL = -1e30      # finite "-inf" for masked edges (bf16/f32 safe)


def _round_up(x, m):
    return (x + m - 1) // m * m


# --------------------------------------------------------------------------
# Kernel 1: fused projection
#   z_slab = h @ [W^T | v_src | v_dst | 0...]  (bf16 MXU, f32 accumulate)
#   then the `ones_col` lane is overwritten with 1.0 (softmax-denominator column).
# --------------------------------------------------------------------------
def _proj_kernel(h_ref, w_ref, z_ref, *, ones_col):
    z = jnp.dot(h_ref[...], w_ref[...], preferred_element_type=jnp.float32)
    col_ids = jax.lax.broadcasted_iota(jnp.int32, z.shape, 1)
    z = jnp.where(col_ids == ones_col, 1.0, z)
    z_ref[...] = z.astype(z_ref.dtype)


# --------------------------------------------------------------------------
# Kernel 2: masked-softmax attention + aggregation (online softmax over src tiles)
#   grid = (n_dst_tiles [parallel], n_src_tiles [arbitrary, reduction])
#   The softmax denominator is accumulated in acc's `ones_col` lane via the
#   ones-column of z, so there is no per-step cross-lane reduction.
# --------------------------------------------------------------------------
def _attn_kernel(*refs, use_residual, ones_col):
    if use_residual:
        sdst_ref, ssrc_ref, adj_ref, z_ref, zres_ref, out_ref, m_sc, acc_sc = refs
    else:
        sdst_ref, ssrc_ref, adj_ref, z_ref, out_ref, m_sc, acc_sc = refs
        zres_ref = None

    k = pl.program_id(1)

    @pl.when(k == 0)
    def _init():
        # m starts at 0.0 (NOT -inf): masked entries are MASK_VAL so exp underflows
        # to exactly 0 without a second select, and e - m_new <= 0 (no overflow).
        m_sc[...] = jnp.zeros(m_sc.shape, m_sc.dtype)
        acc_sc[...] = jnp.zeros(acc_sc.shape, acc_sc.dtype)

    edge_mask = adj_ref[...] != 0                              # [td, ts]

    # per-edge math in the score dtype (bf16 by default: VPU/EUP-native on v6e/v7x)
    e = sdst_ref[...] + ssrc_ref[...]                          # [td,1]+[1,ts] -> [td,ts]
    e = jnp.maximum(e, NEG_SLOPE * e)                          # leaky_relu, 2 VPU ops
    e = jnp.where(edge_mask, e, MASK_VAL)                      # single mask select

    # online softmax update (running stats in f32; values stay bf16-exact)
    m_prev = m_sc[...]
    row_max = jnp.max(e, axis=-1, keepdims=True).astype(jnp.float32)
    m_new = jnp.maximum(m_prev, row_max)
    p = jnp.exp(e - m_new.astype(e.dtype))                     # masked -> exp(-1e30)=0
    scale = jnp.exp(m_prev - m_new)                            # [td,1] f32

    # ones-column of z folds sum(p) (the denominator) into this MXU matmul
    acc_sc[...] = scale * acc_sc[...] + jnp.dot(
        p.astype(z_ref.dtype), z_ref[...], preferred_element_type=jnp.float32)
    m_sc[...] = m_new

    @pl.when(k == pl.num_programs(1) - 1)
    def _finalize():
        acc = acc_sc[...]
        col_ids = jax.lax.broadcasted_iota(jnp.int32, acc.shape, 1)
        l = jnp.sum(jnp.where(col_ids == ones_col, acc, 0.0),
                    axis=-1, keepdims=True)                    # denominator column
        # normalize after the aggregation matmul; guard zero in-degree rows
        # (reference would produce NaN there; we deliberately return 0)
        inv = pl.reciprocal(jnp.maximum(l, 1e-30), approx=True)
        res = acc * inv
        if use_residual:
            res = res + zres_ref[...].astype(jnp.float32)
        out_ref[...] = res.astype(out_ref.dtype)


# --------------------------------------------------------------------------
# Wrapper
# --------------------------------------------------------------------------
def gat_layer(h, w_fc, w_attn, adj, *, use_residual=False,
              tile_dst=512, tile_src=1024, edge_dtype=jnp.bfloat16):
    """h: [N_src, in_dim], w_fc: [out_dim, in_dim], w_attn: [1, 2*out_dim],
    adj: [N_dst, N_src] (nonzero iff edge src i -> dst j); may be passed as
    int8/bool (and pre-padded to tile multiples) to skip conversion.
    Returns [N_dst, out_dim] f32.  DGL block convention: dst nodes are the
    first N_dst src nodes.
    Note (v7x): keep tile_dst small enough that n_dst/tile_dst >= 2 so the
    'parallel' dst axis can be split across both TensorCores."""
    n_src, in_dim = h.shape
    out_dim = w_fc.shape[0]
    n_dst = adj.shape[0]
    assert adj.shape[1] >= n_src and n_dst <= n_src

    bf16, f32 = jnp.bfloat16, jnp.float32

    # tile sizes: clamp to problem size, keep (8, 128) alignment
    tile_dst = _round_up(min(int(tile_dst), _round_up(n_dst, 8)), 8)
    tile_src = _round_up(min(int(tile_src), _round_up(n_src, 128)), 128)

    n_dst_p = _round_up(n_dst, tile_dst)
    n_src_p = _round_up(n_src, tile_src)
    in_dim_p = _round_up(in_dim, 128)

    # lane-dense z slab with 3 spare lanes: src_score, dst_score, ones (denominator)
    out_dim_p = _round_up(out_dim + 3, 128)
    col_src, col_dst, col_one = out_dim, out_dim + 1, out_dim + 2

    # projection row tile: decoupled from tile_src (multiple of it, up to ~2048 rows)
    rows_base = max(n_src_p, n_dst_p)
    mult = max(1, min(2048 // tile_src, rows_base // tile_src))
    tile_proj = tile_src * mult
    n_rows_p = _round_up(rows_base, tile_proj)

    # Fold the two attention projections through W (O(in_dim*out_dim), once):
    #   src_score_i = z_i . a_src = h_i . (W^T a_src), likewise dst_score.
    w32 = w_fc.astype(f32)
    a_vec = w_attn.astype(f32).reshape(-1)
    v_src = w32.T @ a_vec[:out_dim]                            # [in_dim]
    v_dst = w32.T @ a_vec[out_dim:]                            # [in_dim]

    # Padded, dtype-optimized kernel inputs.
    h_p = jnp.zeros((n_rows_p, in_dim_p), bf16).at[:n_src, :in_dim].set(h.astype(bf16))
    wt_p = (jnp.zeros((in_dim_p, out_dim_p), bf16)
            .at[:in_dim, :out_dim].set(w_fc.T.astype(bf16))
            .at[:in_dim, col_src].set(v_src.astype(bf16))
            .at[:in_dim, col_dst].set(v_dst.astype(bf16)))

    # adjacency: accept pre-binarized / pre-padded int8 to avoid O(N^2) conversion
    if adj.dtype == jnp.int8 or adj.dtype == jnp.bool_:
        adj_i8 = adj.astype(jnp.int8)
    else:
        adj_i8 = (adj != 0).astype(jnp.int8)
    if adj_i8.shape == (n_dst_p, n_src_p):
        adj_p = adj_i8
    else:
        adj_p = jnp.zeros((n_dst_p, n_src_p), jnp.int8).at[:n_dst, :n_src].set(
            adj_i8[:n_dst, :n_src])

    vmem_cap = 48 * 1024 * 1024   # under the v7x 64 MiB physical ceiling

    # ---- kernel 1: z slab = fc(h) + folded scores + ones column ------------
    z_p = pl.pallas_call(
        functools.partial(_proj_kernel, ones_col=col_one),
        out_shape=jax.ShapeDtypeStruct((n_rows_p, out_dim_p), bf16),
        grid=(n_rows_p // tile_proj,),
        in_specs=[pl.BlockSpec((tile_proj, in_dim_p), lambda r: (r, 0)),
                  pl.BlockSpec((in_dim_p, out_dim_p), lambda r: (0, 0))],
        out_specs=pl.BlockSpec((tile_proj, out_dim_p), lambda r: (r, 0)),
        compiler_params=pltpu.CompilerParams(
            dimension_semantics=("parallel",),
            vmem_limit_bytes=vmem_cap),
    )(h_p, wt_p)

    # O(N) layout plumbing: src scores lane-major [1, n_src_p], dst scores as column.
    ssrc_p = z_p[:n_src_p, col_src].reshape(1, n_src_p).astype(edge_dtype)
    sdst_p = z_p[:n_dst_p, col_dst].reshape(n_dst_p, 1).astype(edge_dtype)

    # ---- kernel 2: masked online-softmax attention + aggregation -----------
    kernel = functools.partial(_attn_kernel, use_residual=use_residual,
                               ones_col=col_one)
    in_specs = [
        pl.BlockSpec((tile_dst, 1), lambda i, k: (i, 0)),          # dst scores (col)
        pl.BlockSpec((1, tile_src), lambda i, k: (0, k)),          # src scores (row)
        pl.BlockSpec((tile_dst, tile_src), lambda i, k: (i, k)),   # adjacency (int8)
        pl.BlockSpec((tile_src, out_dim_p), lambda i, k: (k, 0)),  # z (src tiles)
    ]
    args = [sdst_p, ssrc_p, adj_p, z_p]
    if use_residual:
        in_specs.append(pl.BlockSpec((tile_dst, out_dim_p), lambda i, k: (i, 0)))
        args.append(z_p)                                           # z_dst residual

    out_p = pl.pallas_call(
        kernel,
        out_shape=jax.ShapeDtypeStruct((n_dst_p, out_dim_p), f32),
        grid=(n_dst_p // tile_dst, n_src_p // tile_src),
        in_specs=in_specs,
        out_specs=pl.BlockSpec((tile_dst, out_dim_p), lambda i, k: (i, 0)),
        scratch_shapes=[pltpu.VMEM((tile_dst, 1), f32),            # running max
                        pltpu.VMEM((tile_dst, out_dim_p), f32)],   # running acc (+denom)
        compiler_params=pltpu.CompilerParams(
            dimension_semantics=("parallel", "arbitrary"),
            vmem_limit_bytes=vmem_cap),
    )(*args)

    return out_p[:n_dst, :out_dim]


# --------------------------------------------------------------------------
# Pure-JAX f32 reference of the same dense GAT forward
# --------------------------------------------------------------------------
def gat_layer_ref(h, w_fc, w_attn, adj, *, use_residual=False):
    out_dim = w_fc.shape[0]
    n_dst = adj.shape[0]
    z = h @ w_fc.T
    a_vec = w_attn.reshape(-1)
    src_score = z @ a_vec[:out_dim]
    dst_score = z[:n_dst] @ a_vec[out_dim:]
    e = dst_score[:, None] + src_score[None, :]
    e = jnp.where(e > 0, e, NEG_SLOPE * e)
    e = jnp.where(adj > 0, e, MASK_VAL)
    p = jnp.exp(e - jnp.max(e, axis=-1, keepdims=True)) * (adj > 0)
    alpha = p / jnp.sum(p, axis=-1, keepdims=True)
    out = alpha @ z
    if use_residual:
        out = out + z[:n_dst]
    return out


if __name__ == "__main__":
    # Small but multi-tile: 2 dst tiles x 2 src tiles with the demo tile sizes.
    N_SRC, N_DST = 192, 48
    IN_DIM, OUT_DIM = 32, 32

    key = jax.random.PRNGKey(0)
    k_fc, k_attn, k_h, k_adj = jax.random.split(key, 4)

    # Deterministic xavier_normal_ init with gain = calculate_gain('relu') = sqrt(2)
    gain = math.sqrt(2.0)
    std_fc = gain * math.sqrt(2.0 / (IN_DIM + OUT_DIM))
    std_attn = gain * math.sqrt(2.0 / (2 * OUT_DIM + 1))
    w_fc = std_fc * jax.random.normal(k_fc, (OUT_DIM, IN_DIM), dtype=jnp.float32)
    w_attn = std_attn * jax.random.normal(k_attn, (1, 2 * OUT_DIM), dtype=jnp.float32)

    h = jax.random.normal(k_h, (N_SRC, IN_DIM), dtype=jnp.float32)

    # Random bipartite block adjacency with self-loops (dst nodes are the first
    # N_DST src nodes, as in DGL blocks) so every dst has >= 1 incoming edge.
    adj_f = jax.random.bernoulli(k_adj, 0.4, (N_DST, N_SRC)).astype(jnp.float32)
    adj_f = adj_f.at[jnp.arange(N_DST), jnp.arange(N_DST)].set(1.0)
    adj_i8 = (adj_f != 0).astype(jnp.int8)   # pre-binarized path (no conversion in wrapper)

    ok = True
    for use_residual in (False, True):
        out = gat_layer(h, w_fc, w_attn, adj_i8, use_residual=use_residual,
                        tile_dst=32, tile_src=128)
        out = jax.block_until_ready(out)
        ref = gat_layer_ref(h, w_fc, w_attn, adj_f, use_residual=use_residual)
        # bf16 MXU matmuls + bf16 edge math + approx reciprocal -> bf16-level tolerance
        good = bool(jnp.allclose(out, ref, rtol=5e-2, atol=5e-2))
        if not good:
            print("max abs err:", float(jnp.max(jnp.abs(out - ref))))
        ok = ok and good

    if ok:
        print("KERNEL_OK")
    else:
        print("KERNEL_MISMATCH")
</pallas_src>

<mosaic_0001>
module attributes {stable_mosaic.version = 11 : i64} {
  func.func @_proj_kernel(%arg0: i32, %arg1: memref<256x128xbf16, #tpu.memory_space<vmem>>, %arg2: memref<128x128xbf16, #tpu.memory_space<vmem>>, %arg3: memref<256x128xbf16, #tpu.memory_space<vmem>>) attributes {dimension_semantics = [#tpu.dimension_semantics<parallel>], iteration_bounds = array<i64: 1>, scalar_prefetch = 0 : i64, scratch_operands = 0 : i64, tpu.core_type = #tpu.core_type<tc>, window_params = [{transform_indices = @transform_0, window_bounds = array<i64: 256, 128>}, {pipeline_mode = #tpu.pipeline_mode<synchronous>, transform_indices = @transform_1, window_bounds = array<i64: 128, 128>}, {transform_indices = @transform_2, window_bounds = array<i64: 256, 128>}]} {
    %c0 = arith.constant 0 : index
    %c0_0 = arith.constant 0 : index
    %0 = vector.load %arg1[%c0, %c0_0] : memref<256x128xbf16, #tpu.memory_space<vmem>>, vector<256x128xbf16>
    %c0_1 = arith.constant 0 : index
    %c0_2 = arith.constant 0 : index
    %1 = vector.load %arg2[%c0_1, %c0_2] : memref<128x128xbf16, #tpu.memory_space<vmem>>, vector<128x128xbf16>
    %cst = arith.constant dense<0.000000e+00> : vector<256x128xf32>
    %2 = tpu.matmul %0, %1, %cst {dimension_numbers = #tpu.dot_dimension_numbers<[1], [0], [0], [1], [0, 0, 1, 1], [], []>} : vector<256x128xbf16>, vector<128x128xbf16>, vector<256x128xf32> -> vector<256x128xf32>
    %3 = tpu.iota {dimensions = array<i32: 1>} : vector<256x128xi32>
    %c34_i32 = arith.constant 34 : i32
    %4 = vector.broadcast %c34_i32 : i32 to vector<256x128xi32>
    %5 = arith.cmpi eq, %3, %4 : vector<256x128xi32>
    %cst_3 = arith.constant 1.000000e+00 : f32
    %6 = vector.broadcast %cst_3 : f32 to vector<256x128xf32>
    %7 = arith.select %5, %6, %2 : vector<256x128xi1>, vector<256x128xf32>
    %8 = arith.truncf %7 : vector<256x128xf32> to vector<256x128xbf16>
    %c0_4 = arith.constant 0 : index
    %c0_5 = arith.constant 0 : index
    %9 = vector.load %arg3[%c0_4, %c0_5] : memref<256x128xbf16, #tpu.memory_space<vmem>>, vector<256x128xbf16>
    tpu.vector_store %arg3[%c0_4, %c0_5], %8 {strides = array<i32>} : memref<256x128xbf16, #tpu.memory_space<vmem>>, vector<256x128xbf16>,
    return
  }
  func.func @transform_0(%arg0: i32) -> (i32, i32) {
    %c0_i32 = arith.constant 0 : i32
    %c0_i32_0 = arith.constant 0 : i32
    return %arg0, %c0_i32 : i32, i32
  }
  func.func @transform_1(%arg0: i32) -> (i32, i32) {
    %c0_i32 = arith.constant 0 : i32
    %c0_i32_0 = arith.constant 0 : i32
    %c0_i32_1 = arith.constant 0 : i32
    return %c0_i32, %c0_i32_0 : i32, i32
  }
  func.func @transform_2(%arg0: i32) -> (i32, i32) {
    %c0_i32 = arith.constant 0 : i32
    %c0_i32_0 = arith.constant 0 : i32
    return %arg0, %c0_i32 : i32, i32
  }
}

</mosaic_0001>

<llo_original>
// kernel: tpu_custom_call.1
$region0: #{tpu_custom_call.1}
  #allocation0 [shape = 'u32[]', space=smem, size = 0x4, offset = 0x4, fixed_abs, tag = 'smem constant byte address 0x4 - core index']
  #allocation1 [shape = 'u32[144,128]{1,0:T(1,128)}', space=vmem, size = 0x12000, scoped, tag = 'internal scratch']
  %s0 = inlined_call_operand.hbm [shape: bf16[256,128], index: 0, kind: input, shape index: {}]
  %s1 = inlined_call_operand.hbm [shape: bf16[128,128], index: 1, kind: input, shape index: {}]
  %s2 = inlined_call_operand.hbm [shape: bf16[256,128], index: 2, kind: output, shape index: {}]
  %s3 = sld [smem:[#allocation0]]
  $region26: #{tpu_custom_call.1} parent=0
    _
  %s5 = ssub.s32 1, %s3
  %s6 = scalar_select 0, %s5, %s3
  $region1: #{tpu_custom_call.1} parent=0
    #allocation2 [shape = 'u8[65536]{0}', space=vmem, size = 0x10000, scoped, tag = 'input window, operand 0, single buffered']
    #allocation3 [shape = 's32[1]{0}', space=sflag, size = 0x4, scoped, tag = 'scoped memory for tpu_custom_call.1']
    #allocation4 [shape = 's32[1]{0}', space=sflag, size = 0x4, scoped, tag = 'scoped memory for tpu_custom_call.1']
    #allocation5 [shape = 'u8[32768]{0}', space=vmem, size = 0x8000, scoped, tag = 'input window, operand 1, single buffered']
    #allocation6 [shape = 's32[1]{0}', space=sflag, size = 0x4, scoped, tag = 'scoped memory for tpu_custom_call.1']
    #allocation7 [shape = 'u8[65536]{0}', space=vmem, size = 0x10000, scoped, tag = 'output window, operand 0, single buffered']
    %7 = vsyncpa [#allocation3], 0
    %8 = vsyncpa [#allocation6], 0
    %9 = vsyncpa [#allocation4], 0
    // Predicated region
    $region2: #{tpu_custom_call.1} parent=1 // pred_check
      _
    $region3: #{tpu_custom_call.1} parent=1 // pred_check_branch
      %11 = sbr.rel (0) target = $region5
    $region4: #{tpu_custom_call.1} parent=1 // pred_region
      %s13 = ssub.s32 2048, 2048
      %14 = vsyncadd [#allocation3], %s13
      %s15 = sshll.u32 [#allocation2], 4
      %s16 = int_to_ptr.vmem [resolvable:$true] %s15
      %21 = dma.hbm_to_vmem [thread:$0]  %s0, 2048, %s16, [#allocation3], 64, 64, 4
    $region5: #{tpu_custom_call.1} parent=1 // pred_fallthru
      _
    // Predicated region
    $region6: #{tpu_custom_call.1} parent=1 // pred_check
      _
    $region7: #{tpu_custom_call.1} parent=1 // pred_check_branch
      %23 = sbr.rel (0) target = $region9
    $region8: #{tpu_custom_call.1} parent=1 // pred_region
      %s25 = ssub.s32 1024, 1024
      %26 = vsyncadd [#allocation6], %s25
      %s27 = sshll.u32 [#allocation5], 4
      %s28 = int_to_ptr.vmem [resolvable:$true] %s27
      %33 = dma.hbm_to_vmem [thread:$0]  %s1, 1024, %s28, [#allocation6], 64, 64, 4
    $region9: #{tpu_custom_call.1} parent=1 // pred_fallthru
      _
    // Predicated region
    $region10: #{tpu_custom_call.1} parent=1 // pred_check
      _
    $region11: #{tpu_custom_call.1} parent=1 // pred_check_branch
      %35 = sbr.rel (0) target = $region13
    $region12: #{tpu_custom_call.1} parent=1 // pred_region
      %36 = dma.done [#allocation3], 2048
    $region13: #{tpu_custom_call.1} parent=1 // pred_fallthru
      _
    // Predicated region
    $region14: #{tpu_custom_call.1} parent=1 // pred_check
      _
    $region15: #{tpu_custom_call.1} parent=1 // pred_check_branch
      %38 = sbr.rel (0) target = $region17
    $region16: #{tpu_custom_call.1} parent=1 // pred_region
      %39 = dma.done [#allocation6], 1024
    $region17: #{tpu_custom_call.1} parent=1 // pred_fallthru
      _
    %v41 = vld [vmem:[#allocation2] sm:$0xf]
    %v42 = vld [vmem:[#allocation2 + $0x4] sm:$0xf]
    %v43 = vld [vmem:[#allocation2 + $0x8] sm:$0xf]
    %v44 = vld [vmem:[#allocation2 + $0xc] sm:$0xf]
    %v45 = vld [vmem:[#allocation2 + $0x10] sm:$0xf]
    %v46 = vld [vmem:[#allocation2 + $0x14] sm:$0xf]
    %v47 = vld [vmem:[#allocation2 + $0x18] sm:$0xf]
    %v48 = vld [vmem:[#allocation2 + $0x1c] sm:$0xf]
    %v49 = vld [vmem:[#allocation2 + $0x20] sm:$0xf]
    %v50 = vld [vmem:[#allocation2 + $0x24] sm:$0xf]
    %v51 = vld [vmem:[#allocation2 + $0x28] sm:$0xf]
    %v52 = vld [vmem:[#allocation2 + $0x2c] sm:$0xf]
    %v53 = vld [vmem:[#allocation2 + $0x30] sm:$0xf]
    %v54 = vld [vmem:[#allocation2 + $0x34] sm:$0xf]
    %v55 = vld [vmem:[#allocation2 + $0x38] sm:$0xf]
    %v56 = vld [vmem:[#allocation2 + $0x3c] sm:$0xf]
    %v57 = vld [vmem:[#allocation2 + $0x40] sm:$0xf]
    %v58 = vld [vmem:[#allocation2 + $0x44] sm:$0xf]
    %v59 = vld [vmem:[#allocation2 + $0x48] sm:$0xf]
    %v60 = vld [vmem:[#allocation2 + $0x4c] sm:$0xf]
    %v61 = vld [vmem:[#allocation2 + $0x50] sm:$0xf]
    %v62 = vld [vmem:[#allocation2 + $0x54] sm:$0xf]
    %v63 = vld [vmem:[#allocation2 + $0x58] sm:$0xf]
    %v64 = vld [vmem:[#allocation2 + $0x5c] sm:$0xf]
    %v65 = vld [vmem:[#allocation2 + $0x60] sm:$0xf]
    %v66 = vld [vmem:[#allocation2 + $0x64] sm:$0xf]
    %v67 = vld [vmem:[#allocation2 + $0x68] sm:$0xf]
    %v68 = vld [vmem:[#allocation2 + $0x6c] sm:$0xf]
    %v69 = vld [vmem:[#allocation2 + $0x70] sm:$0xf]
    %v70 = vld [vmem:[#allocation2 + $0x74] sm:$0xf]
    %v71 = vld [vmem:[#allocation2 + $0x78] sm:$0xf]
    %v72 = vld [vmem:[#allocation2 + $0x7c] sm:$0xf]
    %v73 = vld [vmem:[#allocation5] sm:$0xf]
    %v74 = vld [vmem:[#allocation5 + $0x4] sm:$0xf]
    %v75 = vld [vmem:[#allocation5 + $0x8] sm:$0xf]
    %v76 = vld [vmem:[#allocation5 + $0xc] sm:$0xf]
    %v77 = vld [vmem:[#allocation5 + $0x10] sm:$0xf]
    %v78 = vld [vmem:[#allocation5 + $0x14] sm:$0xf]
    %v79 = vld [vmem:[#allocation5 + $0x18] sm:$0xf]
    %v80 = vld [vmem:[#allocation5 + $0x1c] sm:$0xf]
    %v81 = vld [vmem:[#allocation5 + $0x20] sm:$0xf]
    %v82 = vld [vmem:[#allocation5 + $0x24] sm:$0xf]
    %v83 = vld [vmem:[#allocation5 + $0x28] sm:$0xf]
    %v84 = vld [vmem:[#allocation5 + $0x2c] sm:$0xf]
    %v85 = vld [vmem:[#allocation5 + $0x30] sm:$0xf]
    %v86 = vld [vmem:[#allocation5 + $0x34] sm:$0xf]
    %v87 = vld [vmem:[#allocation5 + $0x38] sm:$0xf]
    %v88 = vld [vmem:[#allocation5 + $0x3c] sm:$0xf]
    %v121 = vunpack.c.l.b16 %v41
    %v122 = vunpack.c.l.b16 %v42
    %v123 = vunpack.c.l.b16 %v43
    %v124 = vunpack.c.l.b16 %v44
    %v125 = vunpack.c.l.b16 %v45
    %v126 = vunpack.c.l.b16 %v46
    %v127 = vunpack.c.l.b16 %v47
    %v128 = vunpack.c.l.b16 %v48
    %v129 = vunpack.c.l.b16 %v49
    %v130 = vunpack.c.l.b16 %v50
    %v131 = vunpack.c.l.b16 %v51
    %v132 = vunpack.c.l.b16 %v52
    %v133 = vunpack.c.l.b16 %v53
    %v134 = vunpack.c.l.b16 %v54
    %v135 = vunpack.c.l.b16 %v55
    %v136 = vunpack.c.l.b16 %v56
    %v137 = vunpack.c.l.b16 %v57
    %v138 = vunpack.c.l.b16 %v58
    %v139 = vunpack.c.l.b16 %v59
    %v140 = vunpack.c.l.b16 %v60
    %v141 = vunpack.c.l.b16 %v61
    %v142 = vunpack.c.l.b16 %v62
    %v143 = vunpack.c.l.b16 %v63
    %v144 = vunpack.c.l.b16 %v64
    %v145 = vunpack.c.l.b16 %v65
    %v146 = vunpack.c.l.b16 %v66
    %v147 = vunpack.c.l.b16 %v67
    %v148 = vunpack.c.l.b16 %v68
    %v149 = vunpack.c.l.b16 %v69
    %v150 = vunpack.c.l.b16 %v70
    %v151 = vunpack.c.l.b16 %v71
    %v152 = vunpack.c.l.b16 %v72
    %v153 = vpack.c.b16 %v122, %v121
    %v154 = vpack.c.b16 %v124, %v123
    %v155 = vpack.c.b16 %v126, %v125
    %v156 = vpack.c.b16 %v128, %v127
    %v157 = vpack.c.b16 %v130, %v129
    %v158 = vpack.c.b16 %v132, %v131
    %v159 = vpack.c.b16 %v134, %v133
    %v160 = vpack.c.b16 %v136, %v135
    %v161 = vpack.c.b16 %v138, %v137
    %v162 = vpack.c.b16 %v140, %v139
    %v163 = vpack.c.b16 %v142, %v141
    %v164 = vpack.c.b16 %v144, %v143
    %v165 = vpack.c.b16 %v146, %v145
    %v166 = vpack.c.b16 %v148, %v147
    %v167 = vpack.c.b16 %v150, %v149
    %v168 = vpack.c.b16 %v152, %v151
    %v201 = vunpack.c.l.b16 %v73
    %v202 = vunpack.c.l.b16 %v74
    %v203 = vunpack.c.l.b16 %v75
    %v204 = vunpack.c.l.b16 %v76
    %v205 = vunpack.c.l.b16 %v77
    %v206 = vunpack.c.l.b16 %v78
    %v207 = vunpack.c.l.b16 %v79
    %v208 = vunpack.c.l.b16 %v80
    %v209 = vunpack.c.l.b16 %v81
    %v210 = vunpack.c.l.b16 %v82
    %v211 = vunpack.c.l.b16 %v83
    %v212 = vunpack.c.l.b16 %v84
    %v213 = vunpack.c.l.b16 %v85
    %v214 = vunpack.c.l.b16 %v86
    %v215 = vunpack.c.l.b16 %v87
    %v216 = vunpack.c.l.b16 %v88
    %v217 = vpack.c.b16 %v202, %v201
    %v218 = vpack.c.b16 %v204, %v203
    %v219 = vpack.c.b16 %v206, %v205
    %v220 = vpack.c.b16 %v208, %v207
    %v221 = vpack.c.b16 %v210, %v209
    %v222 = vpack.c.b16 %v212, %v211
    %v223 = vpack.c.b16 %v214, %v213
    %v224 = vpack.c.b16 %v216, %v215
    %233 = vmatprep.subr.bf16.mxu0 0
    %234 = vmatpush1.bf16.msra.mxu0 %v217
    %235 = vmatprep.subr.bf16.mxu0 0
    %236 = vmatpush1.bf16.msra.mxu0 %v218
    %237 = vmatprep.subr.bf16.mxu0 0
    %238 = vmatpush1.bf16.msra.mxu0 %v219
    %239 = vmatprep.subr.bf16.mxu0 0
    %240 = vmatpush1.bf16.msra.mxu0 %v220
    %241 = vmatprep.subr.bf16.mxu0 0
    %242 = vmatpush1.bf16.msra.mxu0 %v221
    %243 = vmatprep.subr.bf16.mxu0 0
    %244 = vmatpush1.bf16.msra.mxu0 %v222
    %245 = vmatprep.subr.bf16.mxu0 0
    %246 = vmatpush1.bf16.msra.mxu0 %v223
    %247 = vmatprep.subr.bf16.mxu0 0
    %248 = vmatpush1.bf16.msra.mxu0 %v224
    %249 = vmatprep.subr.bf16.mxu0 0
    %250 = vmatpush1.bf16.msra.mxu0 0
    %251 = vmatprep.subr.bf16.mxu0 0
    %252 = vmatpush1.bf16.msra.mxu0 0
    %253 = vmatprep.subr.bf16.mxu0 0
    %254 = vmatpush1.bf16.msra.mxu0 0
    %255 = vmatprep.subr.bf16.mxu0 0
    %256 = vmatpush1.bf16.msra.mxu0 0
    %257 = vmatprep.subr.bf16.mxu0 0
    %258 = vmatpush1.bf16.msra.mxu0 0
    %259 = vmatprep.subr.bf16.mxu0 0
    %260 = vmatpush1.bf16.msra.mxu0 0
    %261 = vmatprep.subr.bf16.mxu0 0
    %262 = vmatpush1.bf16.msra.mxu0 0
    %263 = vmatprep.subr.bf16.mxu0 0
    %264 = vmatpush1.bf16.msra.mxu0 0
    %265 = vmatprep.mubr.bf16.mxu0 0
    %266 = vmatmul.mubr.bf16.gmra.mrb[0].mxu0 %v153
    %v267 = vpop.f32.mrb[0].mxu0
    %v268 = vadd.f32 0.0, %v267
    %v269 = vpop.f32.mrb[0].mxu0
    %v270 = vpop.f32.mrb[0].mxu0
    %v271 = vadd.f32 0.0, %v270
    %v272 = vpop.f32.mrb[0].mxu0
    %273 = vmatprep.mubr.bf16.mxu0 0
    %274 = vmatmul.mubr.bf16.gmra.mrb[0].mxu0 %v154
    %v275 = vpop.f32.mrb[0].mxu0
    %v276 = vadd.f32 0.0, %v275
    %v277 = vpop.f32.mrb[0].mxu0
    %v278 = vpop.f32.mrb[0].mxu0
    %v279 = vadd.f32 0.0, %v278
    %v280 = vpop.f32.mrb[0].mxu0
    %281 = vmatprep.mubr.bf16.mxu0 0
    %282 = vmatmul.mubr.bf16.gmra.mrb[0].mxu0 %v155
    %v283 = vpop.f32.mrb[0].mxu0
    %v284 = vadd.f32 0.0, %v283
    %v285 = vpop.f32.mrb[0].mxu0
    %v286 = vpop.f32.mrb[0].mxu0
    %v287 = vadd.f32 0.0, %v286
    %v288 = vpop.f32.mrb[0].mxu0
    %289 = vmatprep.mubr.bf16.mxu0 0
    %290 = vmatmul.mubr.bf16.gmra.mrb[0].mxu0 %v156
    %v291 = vpop.f32.mrb[0].mxu0
    %v292 = vadd.f32 0.0, %v291
    %v293 = vpop.f32.mrb[0].mxu0
    %v294 = vpop.f32.mrb[0].mxu0
    %v295 = vadd.f32 0.0, %v294
    %v296 = vpop.f32.mrb[0].mxu0
    %297 = vmatprep.mubr.bf16.mxu0 0
    %298 = vmatmul.mubr.bf16.gmra.mrb[0].mxu0 %v157
    %v299 = vpop.f32.mrb[0].mxu0
    %v300 = vadd.f32 0.0, %v299
    %v301 = vpop.f32.mrb[0].mxu0
    %v302 = vpop.f32.mrb[0].mxu0
    %v303 = vadd.f32 0.0, %v302
    %v304 = vpop.f32.mrb[0].mxu0
    %305 = vmatprep.mubr.bf16.mxu0 0
    %306 = vmatmul.mubr.bf16.gmra.mrb[0].mxu0 %v158
    %v307 = vpop.f32.mrb[0].mxu0
    %v308 = vadd.f32 0.0, %v307
    %v309 = vpop.f32.mrb[0].mxu0
    %v310 = vpop.f32.mrb[0].mxu0
    %v311 = vadd.f32 0.0, %v310
    %v312 = vpop.f32.mrb[0].mxu0
    %313 = vmatprep.mubr.bf16.mxu0 0
    %314 = vmatmul.mubr.bf16.gmra.mrb[0].mxu0 %v159
    %v315 = vpop.f32.mrb[0].mxu0
    %v316 = vadd.f32 0.0, %v315
    %v317 = vpop.f32.mrb[0].mxu0
    %v318 = vpop.f32.mrb[0].mxu0
    %v319 = vadd.f32 0.0, %v318
    %v320 = vpop.f32.mrb[0].mxu0
    %321 = vmatprep.mubr.bf16.mxu0 0
    %322 = vmatmul.mubr.bf16.gmra.mrb[0].mxu0 %v160
    %v323 = vpop.f32.mrb[0].mxu0
    %v324 = vadd.f32 0.0, %v323
    %v325 = vpop.f32.mrb[0].mxu0
    %v326 = vpop.f32.mrb[0].mxu0
    %v327 = vadd.f32 0.0, %v326
    %v328 = vpop.f32.mrb[0].mxu0
    %329 = vmatprep.mubr.bf16.mxu0 0
    %330 = vmatmul.mubr.bf16.gmra.mrb[0].mxu0 %v161
    %v331 = vpop.f32.mrb[0].mxu0
    %v332 = vadd.f32 0.0, %v331
    %v333 = vpop.f32.mrb[0].mxu0
    %v334 = vpop.f32.mrb[0].mxu0
    %v335 = vadd.f32 0.0, %v334
    %v336 = vpop.f32.mrb[0].mxu0
    %337 = vmatprep.mubr.bf16.mxu0 0
    %338 = vmatmul.mubr.bf16.gmra.mrb[0].mxu0 %v162
    %v339 = vpop.f32.mrb[0].mxu0
    %v340 = vadd.f32 0.0, %v339
    %v341 = vpop.f32.mrb[0].mxu0
    %v342 = vpop.f32.mrb[0].mxu0
    %v343 = vadd.f32 0.0, %v342
    %v344 = vpop.f32.mrb[0].mxu0
    %345 = vmatprep.mubr.bf16.mxu0 0
    %346 = vmatmul.mubr.bf16.gmra.mrb[0].mxu0 %v163
    %v347 = vpop.f32.mrb[0].mxu0
    %v348 = vadd.f32 0.0, %v347
    %v349 = vpop.f32.mrb[0].mxu0
    %v350 = vpop.f32.mrb[0].mxu0
    %v351 = vadd.f32 0.0, %v350
    %v352 = vpop.f32.mrb[0].mxu0
    %353 = vmatprep.mubr.bf16.mxu0 0
    %354 = vmatmul.mubr.bf16.gmra.mrb[0].mxu0 %v164
    %v355 = vpop.f32.mrb[0].mxu0
    %v356 = vadd.f32 0.0, %v355
    %v357 = vpop.f32.mrb[0].mxu0
    %v358 = vpop.f32.mrb[0].mxu0
    %v359 = vadd.f32 0.0, %v358
    %v360 = vpop.f32.mrb[0].mxu0
    %361 = vmatprep.mubr.bf16.mxu0 0
    %362 = vmatmul.mubr.bf16.gmra.mrb[0].mxu0 %v165
    %v363 = vpop.f32.mrb[0].mxu0
    %v364 = vadd.f32 0.0, %v363
    %v365 = vpop.f32.mrb[0].mxu0
    %v366 = vpop.f32.mrb[0].mxu0
    %v367 = vadd.f32 0.0, %v366
    %v368 = vpop.f32.mrb[0].mxu0
    %369 = vmatprep.mubr.bf16.mxu0 0
    %370 = vmatmul.mubr.bf16.gmra.mrb[0].mxu0 %v166
    %v371 = vpop.f32.mrb[0].mxu0
    %v372 = vadd.f32 0.0, %v371
    %v373 = vpop.f32.mrb[0].mxu0
    %v374 = vpop.f32.mrb[0].mxu0
    %v375 = vadd.f32 0.0, %v374
    %v376 = vpop.f32.mrb[0].mxu0
    %377 = vmatprep.mubr.bf16.mxu0 0
    %378 = vmatmul.mubr.bf16.gmra.mrb[0].mxu0 %v167
    %v379 = vpop.f32.mrb[0].mxu0
    %v380 = vadd.f32 0.0, %v379
    %v381 = vpop.f32.mrb[0].mxu0
    %v382 = vpop.f32.mrb[0].mxu0
    %v383 = vadd.f32 0.0, %v382
    %v384 = vpop.f32.mrb[0].mxu0
    %385 = vmatprep.mubr.bf16.mxu0 0
    %386 = vmatmul.mubr.bf16.gmra.mrb[0].mxu0 %v168
    %v387 = vpop.f32.mrb[0].mxu0
    %v388 = vadd.f32 0.0, %v387
    %v389 = vpop.f32.mrb[0].mxu0
    %v390 = vpop.f32.mrb[0].mxu0
    %v391 = vadd.f32 0.0, %v390
    %v392 = vpop.f32.mrb[0].mxu0
    %393 = vdwg.mxu0
    %v394 = vlaneseq
    %v395 = vand.u32 %v394, 127
    %vm396 = vcmp.eq.s32.totalorder %v395, 34
    %v397 = vsel %vm396, 1.0, %v268
    %v398 = vsel %vm396, 1.0, %v271
    %v399 = vsel %vm396, 1.0, %v276
    %v400 = vsel %vm396, 1.0, %v279
    %v401 = vsel %vm396, 1.0, %v284
    %v402 = vsel %vm396, 1.0, %v287
    %v403 = vsel %vm396, 1.0, %v292
    %v404 = vsel %vm396, 1.0, %v295
    %v405 = vsel %vm396, 1.0, %v300
    %v406 = vsel %vm396, 1.0, %v303
    %v407 = vsel %vm396, 1.0, %v308
    %v408 = vsel %vm396, 1.0, %v311
    %v409 = vsel %vm396, 1.0, %v316
    %v410 = vsel %vm396, 1.0, %v319
    %v411 = vsel %vm396, 1.0, %v324
    %v412 = vsel %vm396, 1.0, %v327
    %v413 = vsel %vm396, 1.0, %v332
    %v414 = vsel %vm396, 1.0, %v335
    %v415 = vsel %vm396, 1.0, %v340
    %v416 = vsel %vm396, 1.0, %v343
    %v417 = vsel %vm396, 1.0, %v348
    %v418 = vsel %vm396, 1.0, %v351
    %v419 = vsel %vm396, 1.0, %v356
    %v420 = vsel %vm396, 1.0, %v359
    %v421 = vsel %vm396, 1.0, %v364
    %v422 = vsel %vm396, 1.0, %v367
    %v423 = vsel %vm396, 1.0, %v372
    %v424 = vsel %vm396, 1.0, %v375
    %v425 = vsel %vm396, 1.0, %v380
    %v426 = vsel %vm396, 1.0, %v383
    %v427 = vsel %vm396, 1.0, %v388
    %v428 = vsel %vm396, 1.0, %v391
    %v429 = vpack.c.bf16 %v398, %v397
    %v430 = vpack.c.bf16 %v400, %v399
    %v431 = vpack.c.bf16 %v402, %v401
    %v432 = vpack.c.bf16 %v404, %v403
    %v433 = vpack.c.bf16 %v406, %v405
    %v434 = vpack.c.bf16 %v408, %v407
    %v435 = vpack.c.bf16 %v410, %v409
    %v436 = vpack.c.bf16 %v412, %v411
    %v437 = vpack.c.bf16 %v414, %v413
    %v438 = vpack.c.bf16 %v416, %v415
    %v439 = vpack.c.bf16 %v418, %v417
    %v440 = vpack.c.bf16 %v420, %v419
    %v441 = vpack.c.bf16 %v422, %v421
    %v442 = vpack.c.bf16 %v424, %v423
    %v443 = vpack.c.bf16 %v426, %v425
    %v444 = vpack.c.bf16 %v428, %v427
    %v461 = vunpack.c.l.b16 %v429
    %v462 = vunpack.c.h.b16 %v429
    %v463 = vunpack.c.l.b16 %v430
    %v464 = vunpack.c.h.b16 %v430
    %v465 = vunpack.c.l.b16 %v431
    %v466 = vunpack.c.h.b16 %v431
    %v467 = vunpack.c.l.b16 %v432
    %v468 = vunpack.c.h.b16 %v432
    %v469 = vunpack.c.l.b16 %v433
    %v470 = vunpack.c.h.b16 %v433
    %v471 = vunpack.c.l.b16 %v434
    %v472 = vunpack.c.h.b16 %v434
    %v473 = vunpack.c.l.b16 %v435
    %v474 = vunpack.c.h.b16 %v435
    %v475 = vunpack.c.l.b16 %v436
    %v476 = vunpack.c.h.b16 %v436
    %v477 = vunpack.c.l.b16 %v437
    %v478 = vunpack.c.h.b16 %v437
    %v479 = vunpack.c.l.b16 %v438
    %v480 = vunpack.c.h.b16 %v438
    %v481 = vunpack.c.l.b16 %v439
    %v482 = vunpack.c.h.b16 %v439
    %v483 = vunpack.c.l.b16 %v440
    %v484 = vunpack.c.h.b16 %v440
    %v485 = vunpack.c.l.b16 %v441
    %v486 = vunpack.c.h.b16 %v441
    %v487 = vunpack.c.l.b16 %v442
    %v488 = vunpack.c.h.b16 %v442
    %v489 = vunpack.c.l.b16 %v443
    %v490 = vunpack.c.h.b16 %v443
    %v491 = vunpack.c.l.b16 %v444
    %v492 = vunpack.c.h.b16 %v444
    %v493 = vpack.c.b16 %v461, %v461
    %v494 = vpack.c.b16 %v462, %v462
    %v495 = vpack.c.b16 %v463, %v463
    %v496 = vpack.c.b16 %v464, %v464
    %v497 = vpack.c.b16 %v465, %v465
    %v498 = vpack.c.b16 %v466, %v466
    %v499 = vpack.c.b16 %v467, %v467
    %v500 = vpack.c.b16 %v468, %v468
    %v501 = vpack.c.b16 %v469, %v469
    %v502 = vpack.c.b16 %v470, %v470
    %v503 = vpack.c.b16 %v471, %v471
    %v504 = vpack.c.b16 %v472, %v472
    %v505 = vpack.c.b16 %v473, %v473
    %v506 = vpack.c.b16 %v474, %v474
    %v507 = vpack.c.b16 %v475, %v475
    %v508 = vpack.c.b16 %v476, %v476
    %v509 = vpack.c.b16 %v477, %v477
    %v510 = vpack.c.b16 %v478, %v478
    %v511 = vpack.c.b16 %v479, %v479
    %v512 = vpack.c.b16 %v480, %v480
    %v513 = vpack.c.b16 %v481, %v481
    %v514 = vpack.c.b16 %v482, %v482
    %v515 = vpack.c.b16 %v483, %v483
    %v516 = vpack.c.b16 %v484, %v484
    %v517 = vpack.c.b16 %v485, %v485
    %v518 = vpack.c.b16 %v486, %v486
    %v519 = vpack.c.b16 %v487, %v487
    %v520 = vpack.c.b16 %v488, %v488
    %v521 = vpack.c.b16 %v489, %v489
    %v522 = vpack.c.b16 %v490, %v490
    %v523 = vpack.c.b16 %v491, %v491
    %v524 = vpack.c.b16 %v492, %v492
    %557 = vst [vmem:[#allocation7] sm:$0xf] %v493
    %558 = vst [vmem:[#allocation7 + $0x4] sm:$0xf] %v494
    %559 = vst [vmem:[#allocation7 + $0x8] sm:$0xf] %v495
    %560 = vst [vmem:[#allocation7 + $0xc] sm:$0xf] %v496
    %561 = vst [vmem:[#allocation7 + $0x10] sm:$0xf] %v497
    %562 = vst [vmem:[#allocation7 + $0x14] sm:$0xf] %v498
    %563 = vst [vmem:[#allocation7 + $0x18] sm:$0xf] %v499
    %564 = vst [vmem:[#allocation7 + $0x1c] sm:$0xf] %v500
    %565 = vst [vmem:[#allocation7 + $0x20] sm:$0xf] %v501
    %566 = vst [vmem:[#allocation7 + $0x24] sm:$0xf] %v502
    %567 = vst [vmem:[#allocation7 + $0x28] sm:$0xf] %v503
    %568 = vst [vmem:[#allocation7 + $0x2c] sm:$0xf] %v504
    %569 = vst [vmem:[#allocation7 + $0x30] sm:$0xf] %v505
    %570 = vst [vmem:[#allocation7 + $0x34] sm:$0xf] %v506
    %571 = vst [vmem:[#allocation7 + $0x38] sm:$0xf] %v507
    %572 = vst [vmem:[#allocation7 + $0x3c] sm:$0xf] %v508
    %573 = vst [vmem:[#allocation7 + $0x40] sm:$0xf] %v509
    %574 = vst [vmem:[#allocation7 + $0x44] sm:$0xf] %v510
    %575 = vst [vmem:[#allocation7 + $0x48] sm:$0xf] %v511
    %576 = vst [vmem:[#allocation7 + $0x4c] sm:$0xf] %v512
    %577 = vst [vmem:[#allocation7 + $0x50] sm:$0xf] %v513
    %578 = vst [vmem:[#allocation7 + $0x54] sm:$0xf] %v514
    %579 = vst [vmem:[#allocation7 + $0x58] sm:$0xf] %v515
    %580 = vst [vmem:[#allocation7 + $0x5c] sm:$0xf] %v516
    %581 = vst [vmem:[#allocation7 + $0x60] sm:$0xf] %v517
    %582 = vst [vmem:[#allocation7 + $0x64] sm:$0xf] %v518
    %583 = vst [vmem:[#allocation7 + $0x68] sm:$0xf] %v519
    %584 = vst [vmem:[#allocation7 + $0x6c] sm:$0xf] %v520
    %585 = vst [vmem:[#allocation7 + $0x70] sm:$0xf] %v521
    %586 = vst [vmem:[#allocation7 + $0x74] sm:$0xf] %v522
    %587 = vst [vmem:[#allocation7 + $0x78] sm:$0xf] %v523
    %588 = vst [vmem:[#allocation7 + $0x7c] sm:$0xf] %v524
    // Predicated region
    $region18: #{tpu_custom_call.1} parent=1 // pred_check
      _
    $region19: #{tpu_custom_call.1} parent=1 // pred_check_branch
      %590 = sbr.rel (0) target = $region21
    $region20: #{tpu_custom_call.1} parent=1 // pred_region
      %s592 = ssub.s32 2048, 2048
      %593 = vsyncadd [#allocation4], %s592
      %s594 = sshll.u32 [#allocation7], 4
      %s595 = int_to_ptr.vmem [resolvable:$true] %s594
      %600 = dma.vmem_to_hbm [thread:$0]  %s595, 2048, %s2, [#allocation4], 64, 64, 4
    $region21: #{tpu_custom_call.1} parent=1 // pred_fallthru
      _
    // Predicated region
    $region22: #{tpu_custom_call.1} parent=1 // pred_check
      _
    $region23: #{tpu_custom_call.1} parent=1 // pred_check_branch
      %602 = sbr.rel (0) target = $region25
    $region24: #{tpu_custom_call.1} parent=1 // pred_region
      %603 = dma.done [#allocation4], 2048
    $region25: #{tpu_custom_call.1} parent=1 // pred_fallthru
      _
    %604 = vsyncpa [#allocation3], 1
    %605 = vsyncpa [#allocation6], 1
    %606 = vsyncpa [#allocation4], 1

</llo_original>
